<compile_context>
chip_gen: v6e
topology: v6e:2x2x1
jax: 0.10.0
libtpu: 0.0.40
codegen_flags: <defaults>
</compile_context>

<pallas_src>
import functools
import math

import jax
import jax.numpy as jnp
from jax.experimental import pallas as pl
from jax.experimental.pallas import tpu as pltpu

LANES = 128
SUBLANES = 8
TILE_BYTES = 4 * 1024 * 1024          # per-input VMEM window (4 MiB)
CHUNK_ROWS = 512                      # inner reduction chunk (<=256 KiB f32 temps)
VMEM_LIMIT_BYTES = 40 * 1024 * 1024   # fits v7x (64 MiB phys), raises v5e 16 MiB default
SMALL_N_FAST_PATH = 1 << 20           # plain-XLA fast path below ~1M elements


def _num_tensorcores():
    """Best-effort TensorCore count (2 on v7x, 1 on v5e/v6e); defaults to 1."""
    try:
        kind = jax.devices()[0].device_kind.lower()
        if "v7" in kind:
            return 2
    except Exception:  # pragma: no cover - defensive
        pass
    return 1


def _sq_diff_sum(rec2d, img2d):
    """sum((rec2d - img2d)^2) over a (rows, 128) lane-dense slab via Pallas."""
    rows = rec2d.shape[0]
    assert rec2d.shape == img2d.shape and rows >= SUBLANES
    itemsize = jnp.dtype(rec2d.dtype).itemsize

    # Rows per grid step from a byte budget (constant DMA bytes/step across dtypes).
    tile_rows = TILE_BYTES // (LANES * itemsize)
    tile_rows = max(SUBLANES, min(tile_rows, (rows // SUBLANES) * SUBLANES))
    if tile_rows >= CHUNK_ROWS:
        tile_rows = (tile_rows // CHUNK_ROWS) * CHUNK_ROWS
    chunk = min(CHUNK_ROWS, tile_rows)
    n_chunks = tile_rows // chunk

    n_blocks = pl.cdiv(rows, tile_rows)
    ragged = (rows % tile_rows) != 0          # only possible when n_blocks > 1

    # Outer split only when it costs nothing (evenly divides) and the chip has 2 TCs.
    n_cores = _num_tensorcores()
    n_outer = n_cores if (n_cores > 1 and n_blocks % n_cores == 0) else 1
    n_inner = n_blocks // n_outer

    def in_map(i, j):
        return (i * n_inner + j, 0)

    def kernel(rec_ref, img_ref, out_ref):
        j = pl.program_id(1)

        @pl.when(j == 0)
        def _init():
            out_ref[...] = jnp.zeros_like(out_ref)

        blk = pl.program_id(0) * n_inner + j      # global block id
        row0 = blk * tile_rows                    # first global row of this block

        def accumulate(masked):
            def body(c, acc):
                r0 = pl.multiple_of(c * chunk, chunk)
                r = rec_ref[pl.ds(r0, chunk), :].astype(jnp.float32)
                g = img_ref[pl.ds(r0, chunk), :].astype(jnp.float32)
                d = r - g
                sq = d * d
                if masked:
                    # Select AFTER the square: OOB-padded garbage (NaN/Inf) is discarded.
                    rid = (row0 + r0
                           + jax.lax.broadcasted_iota(jnp.int32, (chunk, LANES), 0))
                    sq = jnp.where(rid < rows, sq, 0.0)
                # (chunk,128) -> (chunk//8,8,128); axis-0 reduce = plain vreg VPU adds.
                return acc + sq.reshape(chunk // SUBLANES, SUBLANES, LANES).sum(axis=0)

            acc = jax.lax.fori_loop(0, n_chunks, body,
                                    jnp.zeros((SUBLANES, LANES), jnp.float32))
            out_ref[...] += acc[None]

        if ragged:
            # Only the single ragged block pays the iota/compare/select cost.
            @pl.when(blk == n_blocks - 1)
            def _():
                accumulate(True)

            @pl.when(blk != n_blocks - 1)
            def _():
                accumulate(False)
        else:
            accumulate(False)

    n_main = rows * LANES
    partials = pl.pallas_call(
        kernel,
        out_shape=jax.ShapeDtypeStruct((n_outer, SUBLANES, LANES), jnp.float32),
        grid_spec=pltpu.PrefetchScalarGridSpec(
            num_scalar_prefetch=0,
            grid=(n_outer, n_inner),
            in_specs=[
                pl.BlockSpec((tile_rows, LANES), in_map),
                pl.BlockSpec((tile_rows, LANES), in_map),
            ],
            out_specs=pl.BlockSpec((1, SUBLANES, LANES), lambda i, j: (i, 0, 0)),
        ),
        compiler_params=pltpu.CompilerParams(
            dimension_semantics=("parallel", "arbitrary"),
            vmem_limit_bytes=VMEM_LIMIT_BYTES,
        ),
        cost_estimate=pl.CostEstimate(
            flops=3 * n_main,
            transcendentals=0,
            bytes_accessed=2 * n_main * itemsize + n_outer * SUBLANES * LANES * 4,
        ),
    )(rec2d, img2d)
    # Tiny (n_outer,8,128) cross-lane finish in plain JAX.
    return jnp.sum(partials)


def djsccn_loss(rec, img, rec_coeff, use_pallas=None):
    """total_loss = rec_coeff * mean((rec - img)^2)  (== nn.MSELoss semantics)."""
    assert rec.shape == img.shape, "rec/img must have identical shapes"
    n = math.prod(rec.shape)
    scale = jnp.asarray(rec_coeff, jnp.float32) / jnp.float32(n)

    if use_pallas is None:
        use_pallas = n >= SMALL_N_FAST_PATH
    rows = n // LANES

    if (not use_pallas) or rows < SUBLANES:
        # Small-input fast path: a plain XLA fusion beats pallas_call fixed cost.
        d = rec.astype(jnp.float32) - img.astype(jnp.float32)
        return jnp.sum(d * d) * scale

    rec_flat = jnp.ravel(rec)   # native dtype; no wrapper-side upcast or pad
    img_flat = jnp.ravel(img)
    covered = rows * LANES
    rec2d = (rec_flat if covered == n else rec_flat[:covered]).reshape(rows, LANES)
    img2d = (img_flat if covered == n else img_flat[:covered]).reshape(rows, LANES)
    total_sq = _sq_diff_sum(rec2d, img2d)
    if covered < n:
        # Tiny (<128 elem) ragged lane tail in plain JAX.
        dt = (rec_flat[covered:].astype(jnp.float32)
              - img_flat[covered:].astype(jnp.float32))
        total_sq = total_sq + jnp.sum(dt * dt)
    return total_sq * scale


if __name__ == "__main__":
    key = jax.random.PRNGKey(0)
    k1, k2, k3, k4 = jax.random.split(key, 4)
    rec_coeff = 0.5  # stands in for args.rec_coeff

    # 1) Small demo shape (NCHW, consistent with DJSCC-N) — force the Pallas path
    #    so the kernel itself is exercised even below the fast-path threshold.
    rec_s = jax.random.normal(k1, (2, 4, 16, 16), dtype=jnp.float32)
    img_s = jax.random.normal(k2, (2, 4, 16, 16), dtype=jnp.float32)
    loss_small = jax.jit(
        functools.partial(djsccn_loss, rec_coeff=rec_coeff, use_pallas=True)
    )(rec_s, img_s)
    jax.block_until_ready(loss_small)
    ref_small = rec_coeff * jnp.mean((rec_s - img_s) ** 2)
    assert jnp.allclose(loss_small, ref_small, rtol=1e-5, atol=1e-6), (loss_small, ref_small)

    # 2) Larger image batch — auto-dispatches to Pallas and exercises the
    #    multi-block grid plus the pl.when-gated ragged last block.
    rec_l = jax.random.normal(k3, (8, 3, 224, 224), dtype=jnp.float32)
    img_l = jax.random.normal(k4, (8, 3, 224, 224), dtype=jnp.float32)
    loss_large = jax.jit(functools.partial(djsccn_loss, rec_coeff=rec_coeff))(rec_l, img_l)
    jax.block_until_ready(loss_large)
    ref_large = rec_coeff * jnp.mean((rec_l - img_l) ** 2)
    assert jnp.allclose(loss_large, ref_large, rtol=1e-4, atol=1e-6), (loss_large, ref_large)

    print("KERNEL_OK")
</pallas_src>

<mosaic_0001>
module attributes {stable_mosaic.version = 11 : i64} {
  func.func @kernel(%arg0: i32, %arg1: i32, %arg2: memref<16x128xf32, #tpu.memory_space<vmem>>, %arg3: memref<16x128xf32, #tpu.memory_space<vmem>>, %arg4: memref<1x8x128xf32, #tpu.memory_space<vmem>>) attributes {dimension_semantics = [#tpu.dimension_semantics<parallel>, #tpu.dimension_semantics<arbitrary>], iteration_bounds = array<i64: 1, 1>, scalar_prefetch = 0 : i64, scratch_operands = 0 : i64, tpu.core_type = #tpu.core_type<tc>, window_params = [{transform_indices = @transform_0, window_bounds = array<i64: 16, 128>}, {transform_indices = @transform_1, window_bounds = array<i64: 16, 128>}, {transform_indices = @transform_2, window_bounds = array<i64: 1, 8, 128>}]} {
    %c0_i32 = arith.constant 0 : i32
    %0 = arith.cmpi eq, %arg1, %c0_i32 : i32
    %1 = arith.extui %0 : i1 to i32
    %c0_i32_0 = arith.constant 0 : i32
    %2 = arith.cmpi ne, %1, %c0_i32_0 : i32
    scf.if %2 {
      %cst_10 = arith.constant 0.000000e+00 : f32
      %19 = vector.broadcast %cst_10 : f32 to vector<1x8x128xf32>
      %c0_11 = arith.constant 0 : index
      %c0_12 = arith.constant 0 : index
      %c0_13 = arith.constant 0 : index
      %20 = vector.load %arg4[%c0_11, %c0_12, %c0_13] : memref<1x8x128xf32, #tpu.memory_space<vmem>>, vector<1x8x128xf32>
      tpu.vector_store %arg4[%c0_11, %c0_12, %c0_13], %19 {strides = array<i32>} : memref<1x8x128xf32, #tpu.memory_space<vmem>>, vector<1x8x128xf32>,
    } else {
    }
    %cst = arith.constant 0.000000e+00 : f32
    %3 = vector.broadcast %cst : f32 to vector<8x128xf32>
    %c0_i32_1 = arith.constant 0 : i32
    %c16_i32 = arith.constant 16 : i32
    %4 = arith.muli %c0_i32_1, %c16_i32 : i32
    %5 = tpu.assume_multiple %4, 16 : i32
    %6 = arith.index_cast %5 : i32 to index
    %c0 = arith.constant 0 : index
    %7 = vector.load %arg2[%6, %c0] : memref<16x128xf32, #tpu.memory_space<vmem>>, vector<16x128xf32>
    %8 = arith.index_cast %5 : i32 to index
    %c0_2 = arith.constant 0 : index
    %9 = vector.load %arg3[%8, %c0_2] : memref<16x128xf32, #tpu.memory_space<vmem>>, vector<16x128xf32>
    %10 = arith.subf %7, %9 : vector<16x128xf32>
    %11 = arith.mulf %10, %10 : vector<16x128xf32>
    %12 = vector.shape_cast %11 : vector<16x128xf32> to vector<2x8x128xf32>
    %cst_3 = arith.constant dense<0.000000e+00> : vector<8x128xf32>
    %13 = vector.multi_reduction <add>, %12, %cst_3 [0] : vector<2x8x128xf32> to vector<8x128xf32>
    %14 = arith.addf %3, %13 : vector<8x128xf32>
    %c1_i32 = arith.constant 1 : i32
    %c0_4 = arith.constant 0 : index
    %c0_5 = arith.constant 0 : index
    %c0_6 = arith.constant 0 : index
    %15 = vector.load %arg4[%c0_4, %c0_5, %c0_6] : memref<1x8x128xf32, #tpu.memory_space<vmem>>, vector<1x8x128xf32>
    %16 = vector.shape_cast %14 : vector<8x128xf32> to vector<1x8x128xf32>
    %17 = arith.addf %15, %16 : vector<1x8x128xf32>
    %c0_7 = arith.constant 0 : index
    %c0_8 = arith.constant 0 : index
    %c0_9 = arith.constant 0 : index
    %18 = vector.load %arg4[%c0_7, %c0_8, %c0_9] : memref<1x8x128xf32, #tpu.memory_space<vmem>>, vector<1x8x128xf32>
    tpu.vector_store %arg4[%c0_7, %c0_8, %c0_9], %17 {strides = array<i32>} : memref<1x8x128xf32, #tpu.memory_space<vmem>>, vector<1x8x128xf32>,
    return
  }
  func.func @transform_0(%arg0: i32, %arg1: i32) -> (i32, i32) {
    %c1_i32 = arith.constant 1 : i32
    %0 = arith.muli %arg0, %c1_i32 : i32
    %1 = arith.addi %0, %arg1 : i32
    %c0_i32 = arith.constant 0 : i32
    %c0_i32_0 = arith.constant 0 : i32
    return %1, %c0_i32 : i32, i32
  }
  func.func @transform_1(%arg0: i32, %arg1: i32) -> (i32, i32) {
    %c1_i32 = arith.constant 1 : i32
    %0 = arith.muli %arg0, %c1_i32 : i32
    %1 = arith.addi %0, %arg1 : i32
    %c0_i32 = arith.constant 0 : i32
    %c0_i32_0 = arith.constant 0 : i32
    return %1, %c0_i32 : i32, i32
  }
  func.func @transform_2(%arg0: i32, %arg1: i32) -> (i32, i32, i32) {
    %c0_i32 = arith.constant 0 : i32
    %c0_i32_0 = arith.constant 0 : i32
    %c0_i32_1 = arith.constant 0 : i32
    return %arg0, %c0_i32, %c0_i32_0 : i32, i32, i32
  }
}

</mosaic_0001>

<llo_original>
// kernel: djsccn_loss.1
$region0: #{djsccn_loss.1}
  #allocation0 [shape = 'u32[]', space=smem, size = 0x4, offset = 0x4, fixed_abs, tag = 'smem constant byte address 0x4 - core index']
  #allocation1 [shape = 'u32[144,128]{1,0:T(1,128)}', space=vmem, size = 0x12000, scoped, tag = 'internal scratch']
  %s0 = inlined_call_operand.vmem [shape: f32[16,128], index: 0, kind: input, shape index: {}]
  %s1 = inlined_call_operand.vmem [shape: f32[16,128], index: 1, kind: input, shape index: {}]
  %s2 = inlined_call_operand.vmem [shape: f32[1,8,128], index: 2, kind: output, shape index: {}]
  %s3 = sld [smem:[#allocation0]]
  $region22: #{djsccn_loss.1} parent=0
    _
  %s5 = ssub.s32 1, %s3
  %s6 = scalar_select 0, %s5, %s3
  // Predicated region
  $region2: #{djsccn_loss.1} parent=0 // pred_check
    _
  $region3: #{djsccn_loss.1} parent=0 // pred_check_branch
    %8 = sbr.rel (0) target = $region5
  $region4: #{djsccn_loss.1} parent=0 // pred_region
    %s9 = sadd.s32 0, 0
    %s10 = smul.u32 2, %s9
    %p11 = scmp.lt.s32.totalorder %s10, 1
    %s12 = scalar_select %p11, %s10, 1
    %s13 = smul.addr %s12, 8
    %s14 = scalar_lea.vmem %s0, %s13
    %s15 = sadd.s32 0, 0
    %s16 = smul.u32 2, %s15
  $region5: #{djsccn_loss.1} parent=0 // pred_fallthru
    _
  // Predicated region
  $region6: #{djsccn_loss.1} parent=0 // pred_check
    _
  $region7: #{djsccn_loss.1} parent=0 // pred_check_branch
    %18 = sbr.rel (0) target = $region9
  $region8: #{djsccn_loss.1} parent=0 // pred_region
    %s19 = sadd.s32 0, 0
    %s20 = smul.u32 2, %s19
    %p21 = scmp.lt.s32.totalorder %s20, 1
    %s22 = scalar_select %p21, %s20, 1
    %s23 = smul.addr %s22, 8
    %s24 = scalar_lea.vmem %s1, %s23
    %s25 = sadd.s32 0, 0
    %s26 = smul.u32 2, %s25
  $region9: #{djsccn_loss.1} parent=0 // pred_fallthru
    _
  %s27 = sadd.s32 0, 0
  %s28 = smul.u32 2, %s27
  %p29 = scmp.lt.s32.totalorder %s28, 1
  %s30 = scalar_select %p29, %s28, 1
  %s31 = smul.addr %s30, 8
  %s32 = scalar_lea.vmem %s0, %s31
  %s33 = sadd.s32 0, 0
  %s34 = smul.u32 2, %s33
  %p35 = scmp.lt.s32.totalorder %s34, 1
  %s36 = scalar_select %p35, %s34, 1
  %s37 = smul.addr %s36, 8
  %s38 = scalar_lea.vmem %s1, %s37
  %s39 = sadd.s32 0, 0
  %s40 = smul.u32 2, %s39
  %p41 = scmp.lt.s32.totalorder %s40, 1
  %s42 = scalar_select %p41, %s40, 1
  %s43 = smul.addr %s42, 8
  %s44 = scalar_lea.vmem %s0, %s43
  %s45 = sadd.s32 0, 0
  %s46 = smul.u32 2, %s45
  %s47 = sadd.s32 0, 0
  %s48 = smul.u32 2, %s47
  %p49 = scmp.lt.s32.totalorder %s48, 1
  %s50 = scalar_select %p49, %s48, 1
  %s51 = smul.addr %s50, 8
  %s52 = scalar_lea.vmem %s1, %s51
  %s53 = sadd.s32 0, 0
  %s54 = smul.u32 2, %s53
  %p55 = scmp.eq.s32.totalorder 0, 0
  // Predicated region
  $region10: #{djsccn_loss.1} parent=0 // pred_check
    %p56 = pneg %p55
  $region11: #{djsccn_loss.1} parent=0 // pred_check_branch
    %58 = sbr.rel (%p56) target = $region13
  $region12: #{djsccn_loss.1} parent=0 // pred_region
    %59 = vst [vmem:[%s2] sm:$0xff] 0.0
  $region13: #{djsccn_loss.1} parent=0 // pred_fallthru
    _
  %v60 = vld [vmem:[%s44] sm:$0xff]
  %v61 = vld [vmem:[%s44 + $0x8] sm:$0xff]
  %v62 = vld [vmem:[%s52] sm:$0xff]
  %v63 = vld [vmem:[%s52 + $0x8] sm:$0xff]
  %v64 = vsub.f32 %v60, %v62
  %v65 = vsub.f32 %v61, %v63
  %v66 = vmul.f32 %v64, %v64
  %v67 = vmul.f32 %v65, %v65
  %v68 = vadd.f32 %v66, %v67
  %v69 = vadd.f32 %v68, 0.0
  %v70 = vld [vmem:[%s2] sm:$0xff]
  %v71 = vadd.f32 %v70, %v69
  %72 = vst [vmem:[%s2] sm:$0xff] %v71
  // Predicated region
  $region14: #{djsccn_loss.1} parent=0 // pred_check
    _
  $region15: #{djsccn_loss.1} parent=0 // pred_check_branch
    %74 = sbr.rel (0) target = $region17
  $region16: #{djsccn_loss.1} parent=0 // pred_region
    _
  $region17: #{djsccn_loss.1} parent=0 // pred_fallthru
    _
  // Predicated region
  $region18: #{djsccn_loss.1} parent=0 // pred_check
    _
  $region19: #{djsccn_loss.1} parent=0 // pred_check_branch
    %76 = sbr.rel (0) target = $region21
  $region20: #{djsccn_loss.1} parent=0 // pred_region
    _
  $region21: #{djsccn_loss.1} parent=0 // pred_fallthru
    _

</llo_original>
